<compile_context>
chip_gen: v6e
topology: v6e:2x2x1
jax: 0.10.0
libtpu: 0.0.40
codegen_flags: <defaults>
</compile_context>

<pallas_src>
import functools

import jax
import jax.numpy as jnp
from jax import lax
from jax.experimental import pallas as pl
from jax.experimental.pallas import tpu as pltpu

LANE = 128                 # lane width
TM = 128                   # node row tile
MASK_BIAS = -1e9           # additive bias for non-edges (kernel side)
NEG_INF = -9e15            # pyGAT masking constant (reference side)


def _round_up(v, m):
    return (v + m - 1) // m * m


def _vmem_limit_bytes():
    # Generation-aware scoped-VMEM limit: ~3/4 of physical VMEM
    # (128 MiB on v5e/v6e -> 96 MiB, 64 MiB on v7x -> 48 MiB).
    try:
        cap = int(pltpu.get_tpu_info().vmem_capacity_bytes)
    except Exception:
        cap = 64 * 1024 * 1024
    return max(32 * 1024 * 1024, (cap * 3) // 4)


VMEM_LIMIT = _vmem_limit_bytes()


# ----------------------------------------------------------------------------
# Kernel 1: row-tiled dense projection  out = x @ w   (weights resident)
# ----------------------------------------------------------------------------
def _linear_kernel(x_ref, w_ref, o_ref):
    o_ref[...] = jnp.dot(
        x_ref[...], w_ref[...], preferred_element_type=jnp.float32
    ).astype(o_ref.dtype)


def linear_pallas(x, w, out_dtype=jnp.float32):
    """x: [N_p, K], w: [K, M]; N_p % TM == 0, K % 128 == 0, M % 128 == 0."""
    n_p, k = x.shape
    m = w.shape[1]
    return pl.pallas_call(
        _linear_kernel,
        out_shape=jax.ShapeDtypeStruct((n_p, m), out_dtype),
        grid=(n_p // TM,),
        in_specs=[
            pl.BlockSpec((TM, k), lambda i: (i, 0)),
            pl.BlockSpec((k, m), lambda i: (0, 0)),      # weights resident
        ],
        out_specs=pl.BlockSpec((TM, m), lambda i: (i, 0)),
        compiler_params=pltpu.CompilerParams(
            dimension_semantics=("parallel",),
            vmem_limit_bytes=VMEM_LIMIT),
    )(x, w)


# ----------------------------------------------------------------------------
# Kernel 2: dense GAT attention layer, grid = (node row tiles,), heads in-kernel
# ----------------------------------------------------------------------------
def _gat_attention_kernel(sq_ref, sk_ref, wh_ref, bias_ref, o_ref, *,
                          nheads, fph, alpha):
    # sq_ref  : [H, TM, 1]       f32  query-side scores for this row tile
    # sk_ref  : [H, 1, N_p]      f32  key-side scores, all nodes (resident)
    # wh_ref  : [N_p, H*fph]     bf16 lane-packed projected features (resident)
    # bias_ref: [TM, N_p]        bf16 additive mask bias (0 edge / -1e9 non-edge)
    # o_ref   : [TM, H*fph]      f32  ELU( softmax_row(leaky(sq+sk)+bias) @ Wh ) per head
    tm, out_cols = o_ref.shape
    bias = bias_ref[...].astype(jnp.float32)     # cast once per tile, reused by all heads
    whv = wh_ref[...]                            # bf16, MXU consumes directly
    acc = jnp.zeros((tm, out_cols), jnp.float32)
    lane = lax.broadcasted_iota(jnp.int32, (tm, out_cols), 1)

    for h in range(nheads):                      # static unroll; adj tile reused H times
        e = sq_ref[h] + sk_ref[h]                # [TM, N_p] outer sum via broadcast
        e = jnp.where(e > 0, e, alpha * e) + bias   # LeakyReLU + additive mask
        m = jnp.max(e, axis=-1, keepdims=True)
        p = jnp.exp(e - m)                       # unnormalized softmax weights
        inv = 1.0 / jnp.sum(p, axis=-1, keepdims=True)   # exact recip on [TM,1]
        # Full 128-lane MXU pass (MXU has slack); normalize the small result, not p.
        oh = jnp.dot(p.astype(jnp.bfloat16), whv,
                     preferred_element_type=jnp.float32) * inv      # [TM, out_cols]
        if nheads == 1:
            acc = oh
        else:
            sel = (lane >= h * fph) & (lane < (h + 1) * fph)
            acc = jnp.where(sel, oh, acc)        # keep only this head's lane slab

    # ELU epilogue (layer-internal elu for concat=True heads / module F.elu for layer 2)
    o_ref[...] = jnp.where(acc > 0, acc, jnp.exp(jnp.minimum(acc, 0.0)) - 1.0)


def gat_attention_pallas(sq, sk, wh_all, bias, *, nheads, fph, alpha):
    """sq: [H,N_p,1] f32, sk: [H,1,N_p] f32, wh_all: [N_p,H*fph] bf16, bias: [N_p,N_p] bf16."""
    n_p = bias.shape[0]
    out_cols = nheads * fph
    kernel = functools.partial(_gat_attention_kernel,
                               nheads=nheads, fph=fph, alpha=alpha)
    return pl.pallas_call(
        kernel,
        out_shape=jax.ShapeDtypeStruct((n_p, out_cols), jnp.float32),
        grid=(n_p // TM,),
        in_specs=[
            pl.BlockSpec((nheads, TM, 1), lambda i: (0, i, 0)),
            pl.BlockSpec((nheads, 1, n_p), lambda i: (0, 0, 0)),   # resident
            pl.BlockSpec((n_p, out_cols), lambda i: (0, 0)),       # Wh resident
            pl.BlockSpec((TM, n_p), lambda i: (i, 0)),             # bias row tile streamed
        ],
        out_specs=pl.BlockSpec((TM, out_cols), lambda i: (i, 0)),
        compiler_params=pltpu.CompilerParams(
            dimension_semantics=("parallel",),
            vmem_limit_bytes=VMEM_LIMIT),
    )(sq, sk, wh_all, bias)


# ----------------------------------------------------------------------------
# Forward wrapper (padding / lane-packing glue + degenerate final Linear)
# ----------------------------------------------------------------------------
def gat_forward(x, adj, params, *, alpha):
    att_W = params["att_W"]            # [H, nfeat, nhid]
    att_a = params["att_a"]            # [H, 2*nhid, 1]
    out_W = params["out_W"]            # [nhid*H, outd_2]
    out_a = params["out_a"]            # [2*outd_2, 1]
    lin_w = params["lin_w"]            # [1, outd_2]   (PyTorch nn.Linear weight)
    lin_b = params["lin_b"]            # [1]

    n, nfeat = x.shape
    nheads, _, nhid = att_W.shape
    outd_2 = out_W.shape[1]
    assert nhid <= LANE and outd_2 <= LANE, "hidden dims > 128 need feature tiling"

    # Per-head packed lane width: fph1 >= nhid, multiple of 8, heads concatenated
    # along lanes so nheads*fph1 is a multiple of 128 (lane-dense Wh and output).
    fph1 = _round_up(nhid, 8)
    while (nheads * fph1) % LANE:
        fph1 += 8
    n_p = _round_up(max(n, TM), TM)
    nfeat_p = _round_up(nfeat, LANE)

    # ---- zero-padding glue + additive attention-mask bias (dropout = identity, eval) ----
    x_p = jnp.zeros((n_p, nfeat_p), jnp.float32).at[:n, :nfeat].set(x)
    adj_p = jnp.zeros((n_p, n_p), jnp.float32).at[:n, :n].set(adj)
    bias = jnp.where(adj_p > 0, 0.0, MASK_BIAS).astype(jnp.bfloat16)

    # ---- layer 1: all heads' projections as one lane-dense GEMM, bf16 output ----
    w_cat = jnp.zeros((nheads, nfeat_p, fph1), jnp.float32).at[:, :nfeat, :nhid].set(att_W)
    w_cat = jnp.transpose(w_cat, (1, 0, 2)).reshape(nfeat_p, nheads * fph1)
    wh_all = linear_pallas(x_p, w_cat, out_dtype=jnp.bfloat16)     # [n_p, H*fph1] bf16

    # per-head attention score vectors (tiny matvecs; wrapper glue, f32 accumulate)
    a1 = jnp.zeros((nheads, fph1), jnp.float32).at[:, :nhid].set(att_a[:, :nhid, 0])
    a2 = jnp.zeros((nheads, fph1), jnp.float32).at[:, :nhid].set(att_a[:, nhid:, 0])
    wh_h = wh_all.astype(jnp.float32).reshape(n_p, nheads, fph1)
    sq = jnp.einsum("nhf,hf->hn", wh_h, a1)[:, :, None]            # [H, n_p, 1]
    sk = jnp.einsum("nhf,hf->hn", wh_h, a2)[:, None, :]            # [H, 1, n_p]

    # heads: concat=True -> ELU applied inside the layer (kernel epilogue)
    x1 = gat_attention_pallas(sq, sk, wh_all, bias,
                              nheads=nheads, fph=fph1, alpha=alpha)  # [n_p, H*fph1] f32

    # ---- layer 2: out_att (concat=False) followed by the module's F.elu ----
    fph2 = LANE
    w_o = jnp.zeros((nheads, fph1, fph2), jnp.float32)
    w_o = w_o.at[:, :nhid, :outd_2].set(out_W.reshape(nheads, nhid, outd_2))
    w_o = w_o.reshape(nheads * fph1, fph2)
    wh_o = linear_pallas(x1, w_o, out_dtype=jnp.bfloat16)          # [n_p, 128] bf16

    a1o = jnp.zeros((fph2,), jnp.float32).at[:outd_2].set(out_a[:outd_2, 0])
    a2o = jnp.zeros((fph2,), jnp.float32).at[:outd_2].set(out_a[outd_2:, 0])
    wh_o32 = wh_o.astype(jnp.float32)
    sq2 = (wh_o32 @ a1o)[None, :, None]                            # [1, n_p, 1]
    sk2 = (wh_o32 @ a2o)[None, None, :]                            # [1, 1, n_p]

    h2 = gat_attention_pallas(sq2, sk2, wh_o, bias,
                              nheads=1, fph=fph2, alpha=alpha)     # [n_p, 128] f32

    # final Linear(outd_2 -> 1): degenerate 1-column GEMM kept in the wrapper
    return h2[:n, :outd_2] @ lin_w.T + lin_b                       # [n, 1]


# ----------------------------------------------------------------------------
# Pure-JAX reference (unpadded, f32) of the PyTorch module in eval mode
# ----------------------------------------------------------------------------
def gat_reference(x, adj, params, *, alpha):
    def layer(h, W, a):
        d = W.shape[1]
        wh = h @ W
        e = wh @ a[:d] + (wh @ a[d:]).T
        e = jnp.where(e > 0, e, alpha * e)
        e = jnp.where(adj > 0, e, NEG_INF)
        att = jax.nn.softmax(e, axis=1)
        return att @ wh

    att_W, att_a = params["att_W"], params["att_a"]
    heads = [jax.nn.elu(layer(x, att_W[h], att_a[h])) for h in range(att_W.shape[0])]
    x1 = jnp.concatenate(heads, axis=1)
    h2 = jax.nn.elu(layer(x1, params["out_W"], params["out_a"]))
    return h2 @ params["lin_w"].T + params["lin_b"]


if __name__ == "__main__":
    # Small shapes consistent with the module's constructor / forward.
    N, nfeat, nhid, nheads, outd_2 = 80, 48, 16, 4, 24
    alpha = 0.2   # LeakyReLU slope; dropout is identity in eval mode

    key = jax.random.PRNGKey(0)
    ks = jax.random.split(key, 8)

    x = jax.random.normal(ks[0], (N, nfeat), jnp.float32)
    # dense 0/1 adjacency with self loops, as the dense-GAT module expects
    e_rnd = jax.random.bernoulli(ks[1], 0.1, (N, N)).astype(jnp.float32)
    adj = jnp.clip(e_rnd + e_rnd.T + jnp.eye(N, dtype=jnp.float32), 0.0, 1.0)

    s = 0.1
    params = {
        "att_W": s * jax.random.normal(ks[2], (nheads, nfeat, nhid), jnp.float32),
        "att_a": s * jax.random.normal(ks[3], (nheads, 2 * nhid, 1), jnp.float32),
        "out_W": s * jax.random.normal(ks[4], (nhid * nheads, outd_2), jnp.float32),
        "out_a": s * jax.random.normal(ks[5], (2 * outd_2, 1), jnp.float32),
        "lin_w": s * jax.random.normal(ks[6], (1, outd_2), jnp.float32),
        "lin_b": s * jax.random.normal(ks[7], (1,), jnp.float32),
    }

    out = gat_forward(x, adj, params, alpha=alpha)
    out = jax.block_until_ready(out)
    assert out.shape == (N, 1)

    ref = gat_reference(x, adj, params, alpha=alpha)
    max_err = float(jnp.max(jnp.abs(out - ref)))
    # bf16 Wh / bf16 MXU inputs in the kernels -> loosened tolerance
    assert jnp.allclose(out, ref, atol=5e-2, rtol=5e-2), f"max abs err {max_err}"

    print("KERNEL_OK")
</pallas_src>

<mosaic_0001>
module attributes {stable_mosaic.version = 11 : i64} {
  func.func @_linear_kernel(%arg0: i32, %arg1: memref<128x128xf32, #tpu.memory_space<vmem>>, %arg2: memref<128x128xf32, #tpu.memory_space<vmem>>, %arg3: memref<128x128xbf16, #tpu.memory_space<vmem>>) attributes {dimension_semantics = [#tpu.dimension_semantics<parallel>], iteration_bounds = array<i64: 1>, scalar_prefetch = 0 : i64, scratch_operands = 0 : i64, tpu.core_type = #tpu.core_type<tc>, window_params = [{transform_indices = @transform_0, window_bounds = array<i64: 128, 128>}, {pipeline_mode = #tpu.pipeline_mode<synchronous>, transform_indices = @transform_1, window_bounds = array<i64: 128, 128>}, {transform_indices = @transform_2, window_bounds = array<i64: 128, 128>}]} {
    %c0 = arith.constant 0 : index
    %c0_0 = arith.constant 0 : index
    %0 = vector.load %arg1[%c0, %c0_0] : memref<128x128xf32, #tpu.memory_space<vmem>>, vector<128x128xf32>
    %c0_1 = arith.constant 0 : index
    %c0_2 = arith.constant 0 : index
    %1 = vector.load %arg2[%c0_1, %c0_2] : memref<128x128xf32, #tpu.memory_space<vmem>>, vector<128x128xf32>
    %cst = arith.constant dense<0.000000e+00> : vector<128x128xf32>
    %2 = tpu.matmul %0, %1, %cst {dimension_numbers = #tpu.dot_dimension_numbers<[1], [0], [0], [1], [0, 0, 1, 1], [], []>} : vector<128x128xf32>, vector<128x128xf32>, vector<128x128xf32> -> vector<128x128xf32>
    %3 = arith.truncf %2 : vector<128x128xf32> to vector<128x128xbf16>
    %c0_3 = arith.constant 0 : index
    %c0_4 = arith.constant 0 : index
    %4 = vector.load %arg3[%c0_3, %c0_4] : memref<128x128xbf16, #tpu.memory_space<vmem>>, vector<128x128xbf16>
    tpu.vector_store %arg3[%c0_3, %c0_4], %3 {strides = array<i32>} : memref<128x128xbf16, #tpu.memory_space<vmem>>, vector<128x128xbf16>,
    return
  }
  func.func @transform_0(%arg0: i32) -> (i32, i32) {
    %c0_i32 = arith.constant 0 : i32
    %c0_i32_0 = arith.constant 0 : i32
    return %arg0, %c0_i32 : i32, i32
  }
  func.func @transform_1(%arg0: i32) -> (i32, i32) {
    %c0_i32 = arith.constant 0 : i32
    %c0_i32_0 = arith.constant 0 : i32
    %c0_i32_1 = arith.constant 0 : i32
    return %c0_i32, %c0_i32_0 : i32, i32
  }
  func.func @transform_2(%arg0: i32) -> (i32, i32) {
    %c0_i32 = arith.constant 0 : i32
    %c0_i32_0 = arith.constant 0 : i32
    return %arg0, %c0_i32 : i32, i32
  }
}

</mosaic_0001>

<llo_original>
// kernel: tpu_custom_call.1
$region0: #{tpu_custom_call.1}
  #allocation0 [shape = 'u32[]', space=smem, size = 0x4, offset = 0x4, fixed_abs, tag = 'smem constant byte address 0x4 - core index']
  #allocation1 [shape = 'u32[144,128]{1,0:T(1,128)}', space=vmem, size = 0x12000, scoped, tag = 'internal scratch']
  %s0 = inlined_call_operand.hbm [shape: f32[128,128], index: 0, kind: input, shape index: {}]
  %s1 = inlined_call_operand.hbm [shape: f32[128,128], index: 1, kind: input, shape index: {}]
  %s2 = inlined_call_operand.hbm [shape: bf16[128,128], index: 2, kind: output, shape index: {}]
  %s3 = sld [smem:[#allocation0]]
  $region26: #{tpu_custom_call.1} parent=0
    _
  %s5 = ssub.s32 1, %s3
  %s6 = scalar_select 0, %s5, %s3
  $region1: #{tpu_custom_call.1} parent=0
    #allocation2 [shape = 'u8[65536]{0}', space=vmem, size = 0x10000, scoped, tag = 'input window, operand 0, single buffered']
    #allocation3 [shape = 's32[1]{0}', space=sflag, size = 0x4, scoped, tag = 'scoped memory for tpu_custom_call.1']
    #allocation4 [shape = 's32[1]{0}', space=sflag, size = 0x4, scoped, tag = 'scoped memory for tpu_custom_call.1']
    #allocation5 [shape = 'u8[65536]{0}', space=vmem, size = 0x10000, scoped, tag = 'input window, operand 1, single buffered']
    #allocation6 [shape = 's32[1]{0}', space=sflag, size = 0x4, scoped, tag = 'scoped memory for tpu_custom_call.1']
    #allocation7 [shape = 'u8[32768]{0}', space=vmem, size = 0x8000, scoped, tag = 'output window, operand 0, single buffered']
    %7 = vsyncpa [#allocation3], 0
    %8 = vsyncpa [#allocation6], 0
    %9 = vsyncpa [#allocation4], 0
    // Predicated region
    $region2: #{tpu_custom_call.1} parent=1 // pred_check
      _
    $region3: #{tpu_custom_call.1} parent=1 // pred_check_branch
      %11 = sbr.rel (0) target = $region5
    $region4: #{tpu_custom_call.1} parent=1 // pred_region
      %s13 = ssub.s32 2048, 2048
      %14 = vsyncadd [#allocation3], %s13
      %s15 = sshll.u32 [#allocation2], 4
      %s16 = int_to_ptr.vmem [resolvable:$true] %s15
      %21 = dma.hbm_to_vmem [thread:$0]  %s0, 2048, %s16, [#allocation3], 128, 128, 8
    $region5: #{tpu_custom_call.1} parent=1 // pred_fallthru
      _
    // Predicated region
    $region6: #{tpu_custom_call.1} parent=1 // pred_check
      _
    $region7: #{tpu_custom_call.1} parent=1 // pred_check_branch
      %23 = sbr.rel (0) target = $region9
    $region8: #{tpu_custom_call.1} parent=1 // pred_region
      %s25 = ssub.s32 2048, 2048
      %26 = vsyncadd [#allocation6], %s25
      %s27 = sshll.u32 [#allocation5], 4
      %s28 = int_to_ptr.vmem [resolvable:$true] %s27
      %33 = dma.hbm_to_vmem [thread:$0]  %s1, 2048, %s28, [#allocation6], 128, 128, 8
    $region9: #{tpu_custom_call.1} parent=1 // pred_fallthru
      _
    // Predicated region
    $region10: #{tpu_custom_call.1} parent=1 // pred_check
      _
    $region11: #{tpu_custom_call.1} parent=1 // pred_check_branch
      %35 = sbr.rel (0) target = $region13
    $region12: #{tpu_custom_call.1} parent=1 // pred_region
      %36 = dma.done [#allocation3], 2048
    $region13: #{tpu_custom_call.1} parent=1 // pred_fallthru
      _
    // Predicated region
    $region14: #{tpu_custom_call.1} parent=1 // pred_check
      _
    $region15: #{tpu_custom_call.1} parent=1 // pred_check_branch
      %38 = sbr.rel (0) target = $region17
    $region16: #{tpu_custom_call.1} parent=1 // pred_region
      %39 = dma.done [#allocation6], 2048
    $region17: #{tpu_custom_call.1} parent=1 // pred_fallthru
      _
    %v40 = vld [vmem:[#allocation2] sm:$0xff]
    %v41 = vld [vmem:[#allocation2 + $0x8] sm:$0xff]
    %v42 = vld [vmem:[#allocation2 + $0x10] sm:$0xff]
    %v43 = vld [vmem:[#allocation2 + $0x18] sm:$0xff]
    %v44 = vld [vmem:[#allocation2 + $0x20] sm:$0xff]
    %v45 = vld [vmem:[#allocation2 + $0x28] sm:$0xff]
    %v46 = vld [vmem:[#allocation2 + $0x30] sm:$0xff]
    %v47 = vld [vmem:[#allocation2 + $0x38] sm:$0xff]
    %v48 = vld [vmem:[#allocation2 + $0x40] sm:$0xff]
    %v49 = vld [vmem:[#allocation2 + $0x48] sm:$0xff]
    %v50 = vld [vmem:[#allocation2 + $0x50] sm:$0xff]
    %v51 = vld [vmem:[#allocation2 + $0x58] sm:$0xff]
    %v52 = vld [vmem:[#allocation2 + $0x60] sm:$0xff]
    %v53 = vld [vmem:[#allocation2 + $0x68] sm:$0xff]
    %v54 = vld [vmem:[#allocation2 + $0x70] sm:$0xff]
    %v55 = vld [vmem:[#allocation2 + $0x78] sm:$0xff]
    %v56 = vld [vmem:[#allocation5] sm:$0xff]
    %v57 = vld [vmem:[#allocation5 + $0x8] sm:$0xff]
    %v58 = vld [vmem:[#allocation5 + $0x10] sm:$0xff]
    %v59 = vld [vmem:[#allocation5 + $0x18] sm:$0xff]
    %v60 = vld [vmem:[#allocation5 + $0x20] sm:$0xff]
    %v61 = vld [vmem:[#allocation5 + $0x28] sm:$0xff]
    %v62 = vld [vmem:[#allocation5 + $0x30] sm:$0xff]
    %v63 = vld [vmem:[#allocation5 + $0x38] sm:$0xff]
    %v64 = vld [vmem:[#allocation5 + $0x40] sm:$0xff]
    %v65 = vld [vmem:[#allocation5 + $0x48] sm:$0xff]
    %v66 = vld [vmem:[#allocation5 + $0x50] sm:$0xff]
    %v67 = vld [vmem:[#allocation5 + $0x58] sm:$0xff]
    %v68 = vld [vmem:[#allocation5 + $0x60] sm:$0xff]
    %v69 = vld [vmem:[#allocation5 + $0x68] sm:$0xff]
    %v70 = vld [vmem:[#allocation5 + $0x70] sm:$0xff]
    %v71 = vld [vmem:[#allocation5 + $0x78] sm:$0xff]
    %72 = vmatprep.subr.mxu0 0.0
    %73 = vmatpush1.msra.mxu0 %v71
    %74 = vmatprep.subr.mxu0 0.0
    %75 = vmatpush1.msra.mxu0 %v70
    %76 = vmatprep.subr.mxu0 0.0
    %77 = vmatpush1.msra.mxu0 %v69
    %78 = vmatprep.subr.mxu0 0.0
    %79 = vmatpush1.msra.mxu0 %v68
    %80 = vmatprep.subr.mxu0 0.0
    %81 = vmatpush1.msra.mxu0 %v67
    %82 = vmatprep.subr.mxu0 0.0
    %83 = vmatpush1.msra.mxu0 %v66
    %84 = vmatprep.subr.mxu0 0.0
    %85 = vmatpush1.msra.mxu0 %v65
    %86 = vmatprep.subr.mxu0 0.0
    %87 = vmatpush1.msra.mxu0 %v64
    %88 = vmatprep.subr.mxu0 0.0
    %89 = vmatpush1.msra.mxu0 %v63
    %90 = vmatprep.subr.mxu0 0.0
    %91 = vmatpush1.msra.mxu0 %v62
    %92 = vmatprep.subr.mxu0 0.0
    %93 = vmatpush1.msra.mxu0 %v61
    %94 = vmatprep.subr.mxu0 0.0
    %95 = vmatpush1.msra.mxu0 %v60
    %96 = vmatprep.subr.mxu0 0.0
    %97 = vmatpush1.msra.mxu0 %v59
    %98 = vmatprep.subr.mxu0 0.0
    %99 = vmatpush1.msra.mxu0 %v58
    %100 = vmatprep.subr.mxu0 0.0
    %101 = vmatpush1.msra.mxu0 %v57
    %102 = vmatprep.subr.mxu0 0.0
    %103 = vmatpush1.msra.mxu0 %v56
    %104 = vmatprep.subr.mxu0 0.0
    %105 = vmatpush2.msra.mxu0 0.0
    %106 = vmatprep.subr.mxu0 0.0
    %107 = vmatpush2.msra.mxu0 0.0
    %108 = vmatprep.subr.mxu0 0.0
    %109 = vmatpush2.msra.mxu0 0.0
    %110 = vmatprep.subr.mxu0 0.0
    %111 = vmatpush2.msra.mxu0 0.0
    %112 = vmatprep.subr.mxu0 0.0
    %113 = vmatpush2.msra.mxu0 0.0
    %114 = vmatprep.subr.mxu0 0.0
    %115 = vmatpush2.msra.mxu0 0.0
    %116 = vmatprep.subr.mxu0 0.0
    %117 = vmatpush2.msra.mxu0 0.0
    %118 = vmatprep.subr.mxu0 0.0
    %119 = vmatpush2.msra.mxu0 0.0
    %120 = vmatprep.subr.mxu0 0.0
    %121 = vmatpush2.msra.mxu0 0.0
    %122 = vmatprep.subr.mxu0 0.0
    %123 = vmatpush2.msra.mxu0 0.0
    %124 = vmatprep.subr.mxu0 0.0
    %125 = vmatpush2.msra.mxu0 0.0
    %126 = vmatprep.subr.mxu0 0.0
    %127 = vmatpush2.msra.mxu0 0.0
    %128 = vmatprep.subr.mxu0 0.0
    %129 = vmatpush2.msra.mxu0 0.0
    %130 = vmatprep.subr.mxu0 0.0
    %131 = vmatpush2.msra.mxu0 0.0
    %132 = vmatprep.subr.mxu0 0.0
    %133 = vmatpush2.msra.mxu0 0.0
    %134 = vmatprep.subr.mxu0 0.0
    %135 = vmatpush2.msra.mxu0 0.0
    %136 = vmatprep.mubr.f32.mxu0 0.0
    %137 = vmatmul.mubr.f32.gmra.mxu0 %v40
    %v138 = vpop.f32.mrf.mxu0
    %v139 = vadd.f32 0.0, %v138
    %v140 = vpop.f32.mrf.mxu0
    %141 = vmatprep.mubr.f32.mxu0 0.0
    %142 = vmatmul.mubr.f32.gmra.mxu0 %v41
    %v143 = vpop.f32.mrf.mxu0
    %v144 = vadd.f32 0.0, %v143
    %v145 = vpop.f32.mrf.mxu0
    %146 = vmatprep.mubr.f32.mxu0 0.0
    %147 = vmatmul.mubr.f32.gmra.mxu0 %v42
    %v148 = vpop.f32.mrf.mxu0
    %v149 = vadd.f32 0.0, %v148
    %v150 = vpop.f32.mrf.mxu0
    %151 = vmatprep.mubr.f32.mxu0 0.0
    %152 = vmatmul.mubr.f32.gmra.mxu0 %v43
    %v153 = vpop.f32.mrf.mxu0
    %v154 = vadd.f32 0.0, %v153
    %v155 = vpop.f32.mrf.mxu0
    %156 = vmatprep.mubr.f32.mxu0 0.0
    %157 = vmatmul.mubr.f32.gmra.mxu0 %v44
    %v158 = vpop.f32.mrf.mxu0
    %v159 = vadd.f32 0.0, %v158
    %v160 = vpop.f32.mrf.mxu0
    %161 = vmatprep.mubr.f32.mxu0 0.0
    %162 = vmatmul.mubr.f32.gmra.mxu0 %v45
    %v163 = vpop.f32.mrf.mxu0
    %v164 = vadd.f32 0.0, %v163
    %v165 = vpop.f32.mrf.mxu0
    %166 = vmatprep.mubr.f32.mxu0 0.0
    %167 = vmatmul.mubr.f32.gmra.mxu0 %v46
    %v168 = vpop.f32.mrf.mxu0
    %v169 = vadd.f32 0.0, %v168
    %v170 = vpop.f32.mrf.mxu0
    %171 = vmatprep.mubr.f32.mxu0 0.0
    %172 = vmatmul.mubr.f32.gmra.mxu0 %v47
    %v173 = vpop.f32.mrf.mxu0
    %v174 = vadd.f32 0.0, %v173
    %v175 = vpop.f32.mrf.mxu0
    %176 = vmatprep.mubr.f32.mxu0 0.0
    %177 = vmatmul.mubr.f32.gmra.mxu0 %v48
    %v178 = vpop.f32.mrf.mxu0
    %v179 = vadd.f32 0.0, %v178
    %v180 = vpop.f32.mrf.mxu0
    %181 = vmatprep.mubr.f32.mxu0 0.0
    %182 = vmatmul.mubr.f32.gmra.mxu0 %v49
    %v183 = vpop.f32.mrf.mxu0
    %v184 = vadd.f32 0.0, %v183
    %v185 = vpop.f32.mrf.mxu0
    %186 = vmatprep.mubr.f32.mxu0 0.0
    %187 = vmatmul.mubr.f32.gmra.mxu0 %v50
    %v188 = vpop.f32.mrf.mxu0
    %v189 = vadd.f32 0.0, %v188
    %v190 = vpop.f32.mrf.mxu0
    %191 = vmatprep.mubr.f32.mxu0 0.0
    %192 = vmatmul.mubr.f32.gmra.mxu0 %v51
    %v193 = vpop.f32.mrf.mxu0
    %v194 = vadd.f32 0.0, %v193
    %v195 = vpop.f32.mrf.mxu0
    %196 = vmatprep.mubr.f32.mxu0 0.0
    %197 = vmatmul.mubr.f32.gmra.mxu0 %v52
    %v198 = vpop.f32.mrf.mxu0
    %v199 = vadd.f32 0.0, %v198
    %v200 = vpop.f32.mrf.mxu0
    %201 = vmatprep.mubr.f32.mxu0 0.0
    %202 = vmatmul.mubr.f32.gmra.mxu0 %v53
    %v203 = vpop.f32.mrf.mxu0
    %v204 = vadd.f32 0.0, %v203
    %v205 = vpop.f32.mrf.mxu0
    %206 = vmatprep.mubr.f32.mxu0 0.0
    %207 = vmatmul.mubr.f32.gmra.mxu0 %v54
    %v208 = vpop.f32.mrf.mxu0
    %v209 = vadd.f32 0.0, %v208
    %v210 = vpop.f32.mrf.mxu0
    %211 = vmatprep.mubr.f32.mxu0 0.0
    %212 = vmatmul.mubr.f32.gmra.mxu0 %v55
    %v213 = vpop.f32.mrf.mxu0
    %v214 = vadd.f32 0.0, %v213
    %v215 = vpop.f32.mrf.mxu0
    %216 = vdwg.mxu0
    %v217 = vpack.c.bf16 %v144, %v139
    %v218 = vpack.c.bf16 %v154, %v149
    %v219 = vpack.c.bf16 %v164, %v159
    %v220 = vpack.c.bf16 %v174, %v169
    %v221 = vpack.c.bf16 %v184, %v179
    %v222 = vpack.c.bf16 %v194, %v189
    %v223 = vpack.c.bf16 %v204, %v199
    %v224 = vpack.c.bf16 %v214, %v209
    %v233 = vunpack.c.l.b16 %v217
    %v234 = vunpack.c.h.b16 %v217
    %v235 = vunpack.c.l.b16 %v218
    %v236 = vunpack.c.h.b16 %v218
    %v237 = vunpack.c.l.b16 %v219
    %v238 = vunpack.c.h.b16 %v219
    %v239 = vunpack.c.l.b16 %v220
    %v240 = vunpack.c.h.b16 %v220
    %v241 = vunpack.c.l.b16 %v221
    %v242 = vunpack.c.h.b16 %v221
    %v243 = vunpack.c.l.b16 %v222
    %v244 = vunpack.c.h.b16 %v222
    %v245 = vunpack.c.l.b16 %v223
    %v246 = vunpack.c.h.b16 %v223
    %v247 = vunpack.c.l.b16 %v224
    %v248 = vunpack.c.h.b16 %v224
    %v249 = vpack.c.b16 %v233, %v233
    %v250 = vpack.c.b16 %v234, %v234
    %v251 = vpack.c.b16 %v235, %v235
    %v252 = vpack.c.b16 %v236, %v236
    %v253 = vpack.c.b16 %v237, %v237
    %v254 = vpack.c.b16 %v238, %v238
    %v255 = vpack.c.b16 %v239, %v239
    %v256 = vpack.c.b16 %v240, %v240
    %v257 = vpack.c.b16 %v241, %v241
    %v258 = vpack.c.b16 %v242, %v242
    %v259 = vpack.c.b16 %v243, %v243
    %v260 = vpack.c.b16 %v244, %v244
    %v261 = vpack.c.b16 %v245, %v245
    %v262 = vpack.c.b16 %v246, %v246
    %v263 = vpack.c.b16 %v247, %v247
    %v264 = vpack.c.b16 %v248, %v248
    %281 = vst [vmem:[#allocation7] sm:$0xf] %v249
    %282 = vst [vmem:[#allocation7 + $0x4] sm:$0xf] %v250
    %283 = vst [vmem:[#allocation7 + $0x8] sm:$0xf] %v251
    %284 = vst [vmem:[#allocation7 + $0xc] sm:$0xf] %v252
    %285 = vst [vmem:[#allocation7 + $0x10] sm:$0xf] %v253
    %286 = vst [vmem:[#allocation7 + $0x14] sm:$0xf] %v254
    %287 = vst [vmem:[#allocation7 + $0x18] sm:$0xf] %v255
    %288 = vst [vmem:[#allocation7 + $0x1c] sm:$0xf] %v256
    %289 = vst [vmem:[#allocation7 + $0x20] sm:$0xf] %v257
    %290 = vst [vmem:[#allocation7 + $0x24] sm:$0xf] %v258
    %291 = vst [vmem:[#allocation7 + $0x28] sm:$0xf] %v259
    %292 = vst [vmem:[#allocation7 + $0x2c] sm:$0xf] %v260
    %293 = vst [vmem:[#allocation7 + $0x30] sm:$0xf] %v261
    %294 = vst [vmem:[#allocation7 + $0x34] sm:$0xf] %v262
    %295 = vst [vmem:[#allocation7 + $0x38] sm:$0xf] %v263
    %296 = vst [vmem:[#allocation7 + $0x3c] sm:$0xf] %v264
    // Predicated region
    $region18: #{tpu_custom_call.1} parent=1 // pred_check
      _
    $region19: #{tpu_custom_call.1} parent=1 // pred_check_branch
      %298 = sbr.rel (0) target = $region21
    $region20: #{tpu_custom_call.1} parent=1 // pred_region
      %s300 = ssub.s32 1024, 1024
      %301 = vsyncadd [#allocation4], %s300
      %s302 = sshll.u32 [#allocation7], 4
      %s303 = int_to_ptr.vmem [resolvable:$true] %s302
      %308 = dma.vmem_to_hbm [thread:$0]  %s303, 1024, %s2, [#allocation4], 64, 64, 4
    $region21: #{tpu_custom_call.1} parent=1 // pred_fallthru
      _
    // Predicated region
    $region22: #{tpu_custom_call.1} parent=1 // pred_check
      _
    $region23: #{tpu_custom_call.1} parent=1 // pred_check_branch
      %310 = sbr.rel (0) target = $region25
    $region24: #{tpu_custom_call.1} parent=1 // pred_region
      %311 = dma.done [#allocation4], 1024
    $region25: #{tpu_custom_call.1} parent=1 // pred_fallthru
      _
    %312 = vsyncpa [#allocation3], 1
    %313 = vsyncpa [#allocation6], 1
    %314 = vsyncpa [#allocation4], 1

</llo_original>
